<compile_context>
chip_gen: v5e
topology: v5e:2x2
jax: 0.10.0
libtpu: 0.0.40
codegen_flags: <defaults>
</compile_context>

<pallas_src>
import numpy as np
import jax
import jax.numpy as jnp
from jax.experimental import pallas as pl
from jax.experimental.pallas import tpu as pltpu

# ---------------- model hyper-parameters (small, deterministic) ----------------
B = 2        # batch
L = 16       # input sequence length (seq_len)
C = 4        # input channels (enc_in)
D = 32       # d_model
DFF = 64     # d_ff
P = 8        # prediction length (pred_len)
C_OUT = 4    # output channels (c_out)
MA_K = 5     # moving-average kernel for series decomposition

BL = B * L
BP = B * P
SLAB_LANES = 128   # lane-dense packed-parameter slab width


def _round8(n: int) -> int:
    return -(-n // 8) * 8


# Packed-slab layout: name -> (row_offset, rows, cols).  Row offsets are padded
# to sublane (8) multiples so every in-kernel slice is sublane-aligned.
_SEG_DIMS = (
    ("w_emb",   C,      D),      # value embedding weight
    ("b_emb",   BL,     D),      # value embedding bias, pre-broadcast
    ("m_stack", 2 * BL, BL),     # [M_sea_bd ; M_trd_bd] stacked time-mix operator
    ("b_mix",   2 * BL, D),      # [b_sea ; b_trd] pre-broadcast
    ("w_ff1",   D,      DFF),
    ("b_ff1",   BL,     DFF),
    ("w_ff2",   DFF,    D),
    ("b_ff2",   BL,     D),
    ("w_pred",  BP,     BL),     # block-diagonal prediction-length head
    ("w_proj",  D,      C_OUT),
    ("b_head",  BP,     C_OUT),  # pre-combined head bias
)
_SEG = {}
_row = 0
for _name, _r, _c in _SEG_DIMS:
    _SEG[_name] = (_row, _r, _c)
    _row += _round8(_r)
SLAB_ROWS = _round8(_row)


def moving_avg_matrix(seq_len: int, k: int) -> np.ndarray:
    """Linear operator equivalent to TimeMixer's series_decomp moving average
    (replicate padding + AvgPool1d(kernel=k, stride=1)) along the time axis."""
    pad = (k - 1) // 2
    a = np.zeros((seq_len, seq_len), dtype=np.float32)
    for t in range(seq_len):
        for j in range(t - pad, t - pad + k):
            jj = min(max(j, 0), seq_len - 1)
            a[t, jj] += 1.0 / k
    return a


# ------------------------------- Pallas kernel ---------------------------------
def _slab(p_ref, name):
    off, rows, cols = _SEG[name]
    return p_ref[off:off + rows, 0:cols]


def timemixer_kernel(x_ref, p_ref, o_ref):
    # x: (B*L, C) -- whole batch flattened into the matmul M dimension.
    x = x_ref[...]

    # value embedding: (B*L, C) @ (C, D) + pre-broadcast bias
    e = (jnp.dot(x, _slab(p_ref, "w_emb"), preferred_element_type=jnp.float32)
         + _slab(p_ref, "b_emb"))

    # folded series-decomposition + seasonal/trend time mixing: both (B*L,B*L)
    # block-diagonal operators are stacked into one (2*B*L, B*L) matmul, gelu
    # is applied to the stacked result, then split at a sublane-aligned row.
    mix = (jnp.dot(_slab(p_ref, "m_stack"), e, preferred_element_type=jnp.float32)
           + _slab(p_ref, "b_mix"))
    g = jax.nn.gelu(mix)
    # TODO(synk): jax.nn.gelu (tanh approx) vs torch's exact-erf GELU; kernel
    # and reference are consistent with each other.
    y = e + g[0:BL, :] + g[BL:2 * BL, :]

    # channel FFN with residual
    h = jax.nn.gelu(jnp.dot(y, _slab(p_ref, "w_ff1"),
                            preferred_element_type=jnp.float32)
                    + _slab(p_ref, "b_ff1"))
    y = (y
         + jnp.dot(h, _slab(p_ref, "w_ff2"), preferred_element_type=jnp.float32)
         + _slab(p_ref, "b_ff2"))

    # reassociated head: project channels first ((B*L, D) @ (D, C_OUT)),
    # then the block-diagonal time head ((B*P, B*L) @ (B*L, C_OUT)).
    yp = jnp.dot(y, _slab(p_ref, "w_proj"), preferred_element_type=jnp.float32)
    o_ref[...] = (jnp.dot(_slab(p_ref, "w_pred"), yp,
                          preferred_element_type=jnp.float32)
                  + _slab(p_ref, "b_head"))


# ----------------------- host-side folding / slab packing -----------------------
def fold_params(params):
    """Fold raw per-sample parameters into batch-block-diagonal operators,
    pre-broadcast every bias, and pack everything into one (SLAB_ROWS, 128)
    lane-dense f32 slab (single DMA at kernel launch)."""
    (w_emb, b_emb, a_ma, w_sea, b_sea, w_trd, b_trd,
     w_ff1, b_ff1, w_ff2, b_ff2, w_pred, b_pred, w_proj, b_proj) = params

    eye_l = jnp.eye(L, dtype=jnp.float32)
    eye_b = jnp.eye(B, dtype=jnp.float32)

    # series decomposition folded into the two time-mix operators
    m_sea = w_sea @ (eye_l - a_ma)                         # (L, L)
    m_trd = w_trd @ a_ma                                   # (L, L)
    # TODO(synk): kron block-diagonalization is O((B*L)^2); fine at this toy
    # size, switch to a "parallel" batch grid with shared (L,L) weights when
    # scaling B or L.
    m_sea_bd = jnp.kron(eye_b, m_sea)                      # (B*L, B*L)
    m_trd_bd = jnp.kron(eye_b, m_trd)                      # (B*L, B*L)
    m_stack = jnp.concatenate([m_sea_bd, m_trd_bd], axis=0)   # (2*B*L, B*L)

    # pre-broadcast all biases to full (rows, cols) so the kernel has no
    # (N,1)/(1,N) broadcasts.
    b_emb_f = jnp.broadcast_to(b_emb, (BL, D))
    b_sea_f = jnp.tile(jnp.broadcast_to(b_sea, (L, D)), (B, 1))
    b_trd_f = jnp.tile(jnp.broadcast_to(b_trd, (L, D)), (B, 1))
    b_mix_f = jnp.concatenate([b_sea_f, b_trd_f], axis=0)     # (2*B*L, D)
    b_ff1_f = jnp.broadcast_to(b_ff1, (BL, DFF))
    b_ff2_f = jnp.broadcast_to(b_ff2, (BL, D))

    w_pred_bd = jnp.kron(eye_b, w_pred)                    # (B*P, B*L)
    # (z + b_pred) @ w_proj + b_proj == z@w_proj + b_pred@sum(w_proj,0) + b_proj
    b_head = b_pred @ jnp.sum(w_proj, axis=0, keepdims=True) + b_proj   # (P, C_OUT)
    b_head_f = jnp.tile(b_head, (B, 1))                    # (B*P, C_OUT)

    segs = {
        "w_emb": w_emb, "b_emb": b_emb_f, "m_stack": m_stack, "b_mix": b_mix_f,
        "w_ff1": w_ff1, "b_ff1": b_ff1_f, "w_ff2": w_ff2, "b_ff2": b_ff2_f,
        "w_pred": w_pred_bd, "w_proj": w_proj, "b_head": b_head_f,
    }
    slab = jnp.zeros((SLAB_ROWS, SLAB_LANES), jnp.float32)
    for name, arr in segs.items():
        off, rows, cols = _SEG[name]
        assert arr.shape == (rows, cols), (name, arr.shape, (rows, cols))
        slab = slab.at[off:off + rows, 0:cols].set(arr.astype(jnp.float32))
    return slab


def timemixer_forward(x, slab):
    """x: (B, L, C) float32 -> (B, P, C_OUT) float32. Single kernel invocation,
    two HBM->VMEM DMAs (x + packed parameter slab)."""
    x2d = x.reshape(BL, C)
    flops = 2 * (BL * C * D            # embedding
                 + 2 * BL * BL * D     # stacked time-mix
                 + BL * D * DFF        # ffn up
                 + BL * DFF * D        # ffn down
                 + BL * D * C_OUT      # channel projection
                 + BP * BL * C_OUT)    # time head
    transcendentals = 2 * BL * D + BL * DFF        # two gelu calls
    bytes_accessed = 4 * (x2d.size + SLAB_ROWS * SLAB_LANES + BP * C_OUT)
    vmem_spec = pl.BlockSpec(memory_space=pltpu.MemorySpace.VMEM)
    out2d = pl.pallas_call(
        timemixer_kernel,
        out_shape=jax.ShapeDtypeStruct((BP, C_OUT), jnp.float32),
        in_specs=[vmem_spec, vmem_spec],
        out_specs=vmem_spec,
        cost_estimate=pl.CostEstimate(flops=flops,
                                      transcendentals=transcendentals,
                                      bytes_accessed=bytes_accessed),
    )(x2d, slab)
    return out2d.reshape(B, P, C_OUT)


# ---------------------- plain-JAX reference (original semantics) ----------------
def timemixer_reference(x, params):
    (w_emb, b_emb, a_ma, w_sea, b_sea, w_trd, b_trd,
     w_ff1, b_ff1, w_ff2, b_ff2, w_pred, b_pred, w_proj, b_proj) = params
    e = jnp.einsum('blc,cd->bld', x, w_emb) + b_emb
    trend = jnp.einsum('ml,bld->bmd', a_ma, e)
    season = e - trend
    season_out = season + jax.nn.gelu(jnp.einsum('ml,bld->bmd', w_sea, season) + b_sea)
    trend_out = trend + jax.nn.gelu(jnp.einsum('ml,bld->bmd', w_trd, trend) + b_trd)
    y = season_out + trend_out
    h = jax.nn.gelu(jnp.einsum('bld,df->blf', y, w_ff1) + b_ff1)
    y = y + jnp.einsum('blf,fd->bld', h, w_ff2) + b_ff2
    z = jnp.einsum('pl,bld->bpd', w_pred, y) + b_pred
    return jnp.einsum('bpd,dc->bpc', z, w_proj) + b_proj


# --------------------------- deterministic parameters ---------------------------
def init_params(key):
    ks = jax.random.split(key, 12)
    scale = lambda fan_in: 1.0 / np.sqrt(fan_in)
    w_emb = jax.random.normal(ks[0], (C, D), jnp.float32) * scale(C)
    b_emb = jnp.zeros((1, D), jnp.float32)
    a_ma = jnp.asarray(moving_avg_matrix(L, MA_K))
    w_sea = jax.random.normal(ks[1], (L, L), jnp.float32) * scale(L)
    b_sea = jax.random.normal(ks[2], (L, 1), jnp.float32) * 0.01
    w_trd = jax.random.normal(ks[3], (L, L), jnp.float32) * scale(L)
    b_trd = jax.random.normal(ks[4], (L, 1), jnp.float32) * 0.01
    w_ff1 = jax.random.normal(ks[5], (D, DFF), jnp.float32) * scale(D)
    b_ff1 = jnp.zeros((1, DFF), jnp.float32)
    w_ff2 = jax.random.normal(ks[6], (DFF, D), jnp.float32) * scale(DFF)
    b_ff2 = jnp.zeros((1, D), jnp.float32)
    w_pred = jax.random.normal(ks[7], (P, L), jnp.float32) * scale(L)
    b_pred = jax.random.normal(ks[8], (P, 1), jnp.float32) * 0.01
    w_proj = jax.random.normal(ks[9], (D, C_OUT), jnp.float32) * scale(D)
    b_proj = jnp.zeros((1, C_OUT), jnp.float32)
    return (w_emb, b_emb, a_ma, w_sea, b_sea, w_trd, b_trd,
            w_ff1, b_ff1, w_ff2, b_ff2, w_pred, b_pred, w_proj, b_proj)


if __name__ == "__main__":
    key = jax.random.PRNGKey(0)
    k_x, k_p = jax.random.split(key)
    x = jax.random.normal(k_x, (B, L, C), jnp.float32)
    params = init_params(k_p)
    slab = fold_params(params)

    out = timemixer_forward(x, slab)
    out = jax.block_until_ready(out)

    ref = jax.block_until_ready(timemixer_reference(x, params))
    assert out.shape == (B, P, C_OUT)
    # folding changes fp32 associativity slightly -> modest tolerance
    np.testing.assert_allclose(np.asarray(out), np.asarray(ref), rtol=1e-4, atol=1e-4)

    print("KERNEL_OK")
</pallas_src>

<mosaic_0001>
module attributes {stable_mosaic.version = 11 : i64} {
  func.func @timemixer_kernel(%arg0: memref<32x4xf32, #tpu.memory_space<vmem>>, %arg1: memref<392x128xf32, #tpu.memory_space<vmem>>, %arg2: memref<16x4xf32, #tpu.memory_space<vmem>>) attributes {dimension_semantics = [], scalar_prefetch = 0 : i64, scratch_operands = 0 : i64, tpu.core_type = #tpu.core_type<tc>} {
    %c0 = arith.constant 0 : index
    %c0_0 = arith.constant 0 : index
    %0 = vector.load %arg0[%c0, %c0_0] : memref<32x4xf32, #tpu.memory_space<vmem>>, vector<32x4xf32>
    %c0_1 = arith.constant 0 : index
    %c0_2 = arith.constant 0 : index
    %1 = vector.load %arg1[%c0_1, %c0_2] : memref<392x128xf32, #tpu.memory_space<vmem>>, vector<4x32xf32>
    %cst = arith.constant dense<0.000000e+00> : vector<32x32xf32>
    %2 = tpu.matmul %0, %1, %cst {dimension_numbers = #tpu.dot_dimension_numbers<[1], [0], [0], [1], [0, 0, 1, 1], [], []>} : vector<32x4xf32>, vector<4x32xf32>, vector<32x32xf32> -> vector<32x32xf32>
    %c8 = arith.constant 8 : index
    %c0_3 = arith.constant 0 : index
    %3 = vector.load %arg1[%c8, %c0_3] : memref<392x128xf32, #tpu.memory_space<vmem>>, vector<32x32xf32>
    %4 = arith.addf %2, %3 : vector<32x32xf32>
    %c40 = arith.constant 40 : index
    %c0_4 = arith.constant 0 : index
    %5 = vector.load %arg1[%c40, %c0_4] : memref<392x128xf32, #tpu.memory_space<vmem>>, vector<64x32xf32>
    %cst_5 = arith.constant dense<0.000000e+00> : vector<64x32xf32>
    %6 = tpu.matmul %5, %4, %cst_5 {dimension_numbers = #tpu.dot_dimension_numbers<[1], [0], [0], [1], [0, 0, 1, 1], [], []>} : vector<64x32xf32>, vector<32x32xf32>, vector<64x32xf32> -> vector<64x32xf32>
    %c104 = arith.constant 104 : index
    %c0_6 = arith.constant 0 : index
    %7 = vector.load %arg1[%c104, %c0_6] : memref<392x128xf32, #tpu.memory_space<vmem>>, vector<64x32xf32>
    %8 = arith.addf %6, %7 : vector<64x32xf32>
    %9 = arith.mulf %8, %8 : vector<64x32xf32>
    %10 = arith.mulf %8, %9 : vector<64x32xf32>
    %cst_7 = arith.constant 4.471500e-02 : f32
    %11 = vector.broadcast %cst_7 : f32 to vector<64x32xf32>
    %12 = arith.mulf %11, %10 : vector<64x32xf32>
    %13 = arith.addf %8, %12 : vector<64x32xf32>
    %cst_8 = arith.constant 0.797884583 : f32
    %14 = vector.broadcast %cst_8 : f32 to vector<64x32xf32>
    %15 = arith.mulf %14, %13 : vector<64x32xf32>
    %16 = math.tanh %15 : vector<64x32xf32>
    %cst_9 = arith.constant 1.000000e+00 : f32
    %17 = vector.broadcast %cst_9 : f32 to vector<64x32xf32>
    %18 = arith.addf %17, %16 : vector<64x32xf32>
    %cst_10 = arith.constant 5.000000e-01 : f32
    %19 = vector.broadcast %cst_10 : f32 to vector<64x32xf32>
    %20 = arith.mulf %19, %18 : vector<64x32xf32>
    %21 = arith.mulf %8, %20 : vector<64x32xf32>
    %22 = vector.extract_strided_slice %21 {offsets = [0, 0], sizes = [32, 32], strides = [1, 1]} : vector<64x32xf32> to vector<32x32xf32>
    %23 = arith.addf %4, %22 : vector<32x32xf32>
    %24 = vector.extract_strided_slice %21 {offsets = [32, 0], sizes = [32, 32], strides = [1, 1]} : vector<64x32xf32> to vector<32x32xf32>
    %25 = arith.addf %23, %24 : vector<32x32xf32>
    %c168 = arith.constant 168 : index
    %c0_11 = arith.constant 0 : index
    %26 = vector.load %arg1[%c168, %c0_11] : memref<392x128xf32, #tpu.memory_space<vmem>>, vector<32x64xf32>
    %cst_12 = arith.constant dense<0.000000e+00> : vector<32x64xf32>
    %27 = tpu.matmul %25, %26, %cst_12 {dimension_numbers = #tpu.dot_dimension_numbers<[1], [0], [0], [1], [0, 0, 1, 1], [], []>} : vector<32x32xf32>, vector<32x64xf32>, vector<32x64xf32> -> vector<32x64xf32>
    %c200 = arith.constant 200 : index
    %c0_13 = arith.constant 0 : index
    %28 = vector.load %arg1[%c200, %c0_13] : memref<392x128xf32, #tpu.memory_space<vmem>>, vector<32x64xf32>
    %29 = arith.addf %27, %28 : vector<32x64xf32>
    %30 = arith.mulf %29, %29 : vector<32x64xf32>
    %31 = arith.mulf %29, %30 : vector<32x64xf32>
    %cst_14 = arith.constant 4.471500e-02 : f32
    %32 = vector.broadcast %cst_14 : f32 to vector<32x64xf32>
    %33 = arith.mulf %32, %31 : vector<32x64xf32>
    %34 = arith.addf %29, %33 : vector<32x64xf32>
    %cst_15 = arith.constant 0.797884583 : f32
    %35 = vector.broadcast %cst_15 : f32 to vector<32x64xf32>
    %36 = arith.mulf %35, %34 : vector<32x64xf32>
    %37 = math.tanh %36 : vector<32x64xf32>
    %cst_16 = arith.constant 1.000000e+00 : f32
    %38 = vector.broadcast %cst_16 : f32 to vector<32x64xf32>
    %39 = arith.addf %38, %37 : vector<32x64xf32>
    %cst_17 = arith.constant 5.000000e-01 : f32
    %40 = vector.broadcast %cst_17 : f32 to vector<32x64xf32>
    %41 = arith.mulf %40, %39 : vector<32x64xf32>
    %42 = arith.mulf %29, %41 : vector<32x64xf32>
    %c232 = arith.constant 232 : index
    %c0_18 = arith.constant 0 : index
    %43 = vector.load %arg1[%c232, %c0_18] : memref<392x128xf32, #tpu.memory_space<vmem>>, vector<64x32xf32>
    %cst_19 = arith.constant dense<0.000000e+00> : vector<32x32xf32>
    %44 = tpu.matmul %42, %43, %cst_19 {dimension_numbers = #tpu.dot_dimension_numbers<[1], [0], [0], [1], [0, 0, 1, 1], [], []>} : vector<32x64xf32>, vector<64x32xf32>, vector<32x32xf32> -> vector<32x32xf32>
    %45 = arith.addf %25, %44 : vector<32x32xf32>
    %c296 = arith.constant 296 : index
    %c0_20 = arith.constant 0 : index
    %46 = vector.load %arg1[%c296, %c0_20] : memref<392x128xf32, #tpu.memory_space<vmem>>, vector<32x32xf32>
    %47 = arith.addf %45, %46 : vector<32x32xf32>
    %c344 = arith.constant 344 : index
    %c0_21 = arith.constant 0 : index
    %48 = vector.load %arg1[%c344, %c0_21] : memref<392x128xf32, #tpu.memory_space<vmem>>, vector<32x4xf32>
    %cst_22 = arith.constant dense<0.000000e+00> : vector<32x4xf32>
    %49 = tpu.matmul %47, %48, %cst_22 {dimension_numbers = #tpu.dot_dimension_numbers<[1], [0], [0], [1], [0, 0, 1, 1], [], []>} : vector<32x32xf32>, vector<32x4xf32>, vector<32x4xf32> -> vector<32x4xf32>
    %c328 = arith.constant 328 : index
    %c0_23 = arith.constant 0 : index
    %50 = vector.load %arg1[%c328, %c0_23] : memref<392x128xf32, #tpu.memory_space<vmem>>, vector<16x32xf32>
    %cst_24 = arith.constant dense<0.000000e+00> : vector<16x4xf32>
    %51 = tpu.matmul %50, %49, %cst_24 {dimension_numbers = #tpu.dot_dimension_numbers<[1], [0], [0], [1], [0, 0, 1, 1], [], []>} : vector<16x32xf32>, vector<32x4xf32>, vector<16x4xf32> -> vector<16x4xf32>
    %c376 = arith.constant 376 : index
    %c0_25 = arith.constant 0 : index
    %52 = vector.load %arg1[%c376, %c0_25] : memref<392x128xf32, #tpu.memory_space<vmem>>, vector<16x4xf32>
    %53 = arith.addf %51, %52 : vector<16x4xf32>
    %c0_26 = arith.constant 0 : index
    %c0_27 = arith.constant 0 : index
    %54 = vector.load %arg2[%c0_26, %c0_27] : memref<16x4xf32, #tpu.memory_space<vmem>>, vector<16x4xf32>
    tpu.vector_store %arg2[%c0_26, %c0_27], %53 {strides = array<i32>} : memref<16x4xf32, #tpu.memory_space<vmem>>, vector<16x4xf32>,
    return
  }
}

</mosaic_0001>

<llo_original>
// kernel: tpu_custom_call.1
$region0: #{tpu_custom_call.1}
  #allocation0 [shape = 'u32[]', space=smem, size = 0x4, offset = 0x4, fixed_abs, tag = 'smem constant byte address 0x4 - core index']
  #allocation1 [shape = 'u32[72,128]{1,0:T(1,128)}', space=vmem, size = 0x9000, scoped, tag = 'internal scratch']
  %s0 = inlined_call_operand.vmem [shape: f32[32,4], index: 0, kind: input, shape index: {}]
  %s1 = inlined_call_operand.hbm [shape: f32[392,128], index: 1, kind: input, shape index: {}]
  %s2 = inlined_call_operand.vmem [shape: f32[16,4], index: 2, kind: output, shape index: {}]
  %s3 = sld [smem:[#allocation0]]
  $region22: #{tpu_custom_call.1} parent=0
    _
  %s5 = ssub.s32 1, %s3
  %s6 = scalar_select 0, %s5, %s3
  $region1: #{tpu_custom_call.1} parent=0
    #allocation2 [shape = 'u8[200704]{0}', space=vmem, size = 0x31000, scoped, tag = 'input window, operand 1, single buffered']
    #allocation3 [shape = 's32[1]{0}', space=sflag, size = 0x4, scoped, tag = 'scoped memory for tpu_custom_call.1']
    %7 = vsyncpa [#allocation3], 0
    // Predicated region
    $region2: #{tpu_custom_call.1} parent=1 // pred_check
      _
    $region3: #{tpu_custom_call.1} parent=1 // pred_check_branch
      %9 = sbr.rel (0) target = $region5
    $region4: #{tpu_custom_call.1} parent=1 // pred_region
      _
    $region5: #{tpu_custom_call.1} parent=1 // pred_fallthru
      _
    // Predicated region
    $region6: #{tpu_custom_call.1} parent=1 // pred_check
      _
    $region7: #{tpu_custom_call.1} parent=1 // pred_check_branch
      %11 = sbr.rel (0) target = $region9
    $region8: #{tpu_custom_call.1} parent=1 // pred_region
      %13 = vsyncadd [#allocation3], 0
      %s14 = sshll.u32 %s1, 4
      %s15 = int_to_ptr.hbm [resolvable:$true] %s14
      %s16 = sshll.u32 [#allocation2], 4
      %s17 = int_to_ptr.vmem [resolvable:$true] %s16
      %22 = dma.hbm_to_vmem [thread:$0]  %s15, 6272, %s17, [#allocation3], 128, 128, 8
    $region9: #{tpu_custom_call.1} parent=1 // pred_fallthru
      _
    // Predicated region
    $region10: #{tpu_custom_call.1} parent=1 // pred_check
      _
    $region11: #{tpu_custom_call.1} parent=1 // pred_check_branch
      %24 = sbr.rel (0) target = $region13
    $region12: #{tpu_custom_call.1} parent=1 // pred_region
      %26 = dma.done [#allocation3], 6272
    $region13: #{tpu_custom_call.1} parent=1 // pred_fallthru
      _
    %v27 = vld [vmem:[%s0] sm:$0xff]
    %v28 = vld [vmem:[%s0 + $0x8] sm:$0xff]
    %v29 = vld [vmem:[%s0 + $0x10] sm:$0xff]
    %v30 = vld [vmem:[%s0 + $0x18] sm:$0xff]
    %v31 = vld [vmem:[#allocation2] sm:$0xf]
    %v32 = vld [vmem:[#allocation2 + $0x8] sm:$0xff]
    %v33 = vld [vmem:[#allocation2 + $0x10] sm:$0xff]
    %v34 = vld [vmem:[#allocation2 + $0x18] sm:$0xff]
    %v35 = vld [vmem:[#allocation2 + $0x20] sm:$0xff]
    %vm36 = vcmask 31744
    %v38 = vsel %vm36, %v27, 0
    %v41 = vsel %vm36, %v28, 0
    %v44 = vsel %vm36, %v29, 0
    %v47 = vsel %vm36, %v30, 0
    %vm49 = vcmask 1043456
    %v51 = vsel %vm49, %v31, 0
    %53 = vmatpush.msra.mxu0 0.0
    %54 = vmatpush.msra.mxu0 0.0
    %55 = vmatpush.msra.mxu0 0.0
    %56 = vmatpush.msra.mxu0 0.0
    %57 = vmatpush.msra.mxu0 0.0
    %58 = vmatpush.msra.mxu0 0.0
    %59 = vmatpush.msra.mxu0 0.0
    %60 = vmatpush.msra.mxu0 0.0
    %61 = vmatpush.msra.mxu0 0.0
    %62 = vmatpush.msra.mxu0 0.0
    %63 = vmatpush.msra.mxu0 0.0
    %64 = vmatpush.msra.mxu0 0.0
    %65 = vmatpush.msra.mxu0 0.0
    %66 = vmatpush.msra.mxu0 0.0
    %67 = vmatpush.msra.mxu0 0.0
    %68 = vmatpush.msra.mxu0 %v51
    %69 = vmatmul.f32.gmra.mxu0 %v38
    %v70 = vpop.f32.mrf.mxu0
    %v71 = vadd.f32 %v32, %v70
    %72 = vmatmul.f32.gmra.mxu0 %v41
    %v73 = vpop.f32.mrf.mxu0
    %v74 = vadd.f32 %v33, %v73
    %75 = vmatmul.f32.gmra.mxu0 %v44
    %v76 = vpop.f32.mrf.mxu0
    %v77 = vadd.f32 %v34, %v76
    %78 = vmatmul.f32.gmra.mxu0 %v47
    %v79 = vpop.f32.mrf.mxu0
    %v80 = vadd.f32 %v35, %v79
    %81 = vdwg.mxu0
    %v82 = vld [vmem:[#allocation2 + $0x28] sm:$0xff]
    %v83 = vld [vmem:[#allocation2 + $0x30] sm:$0xff]
    %v84 = vld [vmem:[#allocation2 + $0x38] sm:$0xff]
    %v85 = vld [vmem:[#allocation2 + $0x40] sm:$0xff]
    %v86 = vld [vmem:[#allocation2 + $0x48] sm:$0xff]
    %v87 = vld [vmem:[#allocation2 + $0x50] sm:$0xff]
    %v88 = vld [vmem:[#allocation2 + $0x58] sm:$0xff]
    %v89 = vld [vmem:[#allocation2 + $0x60] sm:$0xff]
    %v90 = vld [vmem:[#allocation2 + $0x68] sm:$0xff]
    %v91 = vld [vmem:[#allocation2 + $0x70] sm:$0xff]
    %v92 = vld [vmem:[#allocation2 + $0x78] sm:$0xff]
    %v93 = vld [vmem:[#allocation2 + $0x80] sm:$0xff]
    %v94 = vld [vmem:[#allocation2 + $0x88] sm:$0xff]
    %v95 = vld [vmem:[#allocation2 + $0x90] sm:$0xff]
    %v96 = vld [vmem:[#allocation2 + $0x98] sm:$0xff]
    %v97 = vld [vmem:[#allocation2 + $0xa0] sm:$0xff]
    %vm98 = vcmask 261120
    %v100 = vsel %vm98, %v82, 0
    %v103 = vsel %vm98, %v83, 0
    %v106 = vsel %vm98, %v84, 0
    %v109 = vsel %vm98, %v85, 0
    %v112 = vsel %vm98, %v86, 0
    %v115 = vsel %vm98, %v87, 0
    %v118 = vsel %vm98, %v88, 0
    %v121 = vsel %vm98, %v89, 0
    %123 = vmatpush.msra.mxu0 0.0
    %124 = vmatpush.msra.mxu0 0.0
    %125 = vmatpush.msra.mxu0 0.0
    %126 = vmatpush.msra.mxu0 0.0
    %127 = vmatpush.msra.mxu0 0.0
    %128 = vmatpush.msra.mxu0 0.0
    %129 = vmatpush.msra.mxu0 0.0
    %130 = vmatpush.msra.mxu0 0.0
    %131 = vmatpush.msra.mxu0 0.0
    %132 = vmatpush.msra.mxu0 0.0
    %133 = vmatpush.msra.mxu0 0.0
    %134 = vmatpush.msra.mxu0 0.0
    %135 = vmatpush.msra.mxu0 %v80
    %136 = vmatpush.msra.mxu0 %v77
    %137 = vmatpush.msra.mxu0 %v74
    %138 = vmatpush.msra.mxu0 %v71
    %139 = vmatmul.f32.gmra.mxu0 %v100
    %v140 = vpop.f32.mrf.mxu0
    %v141 = vadd.f32 %v90, %v140
    %142 = vmatmul.f32.gmra.mxu0 %v103
    %v143 = vpop.f32.mrf.mxu0
    %v144 = vadd.f32 %v91, %v143
    %145 = vmatmul.f32.gmra.mxu0 %v106
    %v146 = vpop.f32.mrf.mxu0
    %v147 = vadd.f32 %v92, %v146
    %148 = vmatmul.f32.gmra.mxu0 %v109
    %v149 = vpop.f32.mrf.mxu0
    %v150 = vadd.f32 %v93, %v149
    %151 = vmatmul.f32.gmra.mxu0 %v112
    %v152 = vpop.f32.mrf.mxu0
    %v153 = vadd.f32 %v94, %v152
    %154 = vmatmul.f32.gmra.mxu0 %v115
    %v155 = vpop.f32.mrf.mxu0
    %v156 = vadd.f32 %v95, %v155
    %157 = vmatmul.f32.gmra.mxu0 %v118
    %v158 = vpop.f32.mrf.mxu0
    %v159 = vadd.f32 %v96, %v158
    %160 = vmatmul.f32.gmra.mxu0 %v121
    %v161 = vpop.f32.mrf.mxu0
    %v162 = vadd.f32 %v97, %v161
    %163 = vdwg.mxu0
    %v164 = vmul.f32 %v141, %v141
    %v165 = vmul.f32 %v144, %v144
    %v166 = vmul.f32 %v147, %v147
    %v167 = vmul.f32 %v150, %v150
    %v168 = vmul.f32 %v153, %v153
    %v169 = vmul.f32 %v156, %v156
    %v170 = vmul.f32 %v159, %v159
    %v171 = vmul.f32 %v162, %v162
    %v172 = vmul.f32 %v141, %v164
    %v173 = vmul.f32 %v144, %v165
    %v174 = vmul.f32 %v147, %v166
    %v175 = vmul.f32 %v150, %v167
    %v176 = vmul.f32 %v153, %v168
    %v177 = vmul.f32 %v156, %v169
    %v178 = vmul.f32 %v159, %v170
    %v179 = vmul.f32 %v162, %v171
    %v180 = vmul.f32 %v172, 0.044715
    %v181 = vmul.f32 %v173, 0.044715
    %v182 = vmul.f32 %v174, 0.044715
    %v183 = vmul.f32 %v175, 0.044715
    %v184 = vmul.f32 %v176, 0.044715
    %v185 = vmul.f32 %v177, 0.044715
    %v186 = vmul.f32 %v178, 0.044715
    %v187 = vmul.f32 %v179, 0.044715
    %v188 = vadd.f32 %v141, %v180
    %v189 = vadd.f32 %v144, %v181
    %v190 = vadd.f32 %v147, %v182
    %v191 = vadd.f32 %v150, %v183
    %v192 = vadd.f32 %v153, %v184
    %v193 = vadd.f32 %v156, %v185
    %v194 = vadd.f32 %v159, %v186
    %v195 = vadd.f32 %v162, %v187
    %v196 = vmul.f32 %v188, 0.7978846
    %v197 = vmul.f32 %v189, 0.7978846
    %v198 = vmul.f32 %v190, 0.7978846
    %v199 = vmul.f32 %v191, 0.7978846
    %v200 = vmul.f32 %v192, 0.7978846
    %v201 = vmul.f32 %v193, 0.7978846
    %v202 = vmul.f32 %v194, 0.7978846
    %v203 = vmul.f32 %v195, 0.7978846
    %v204 = vtanh.pop %v196
    %v205 = vtanh.pop %v197
    %v206 = vtanh.pop %v198
    %v207 = vtanh.pop %v199
    %v208 = vtanh.pop %v200
    %v209 = vtanh.pop %v201
    %v210 = vtanh.pop %v202
    %v211 = vtanh.pop %v203
    %v212 = vadd.f32 %v204, 1.0
    %v213 = vadd.f32 %v205, 1.0
    %v214 = vadd.f32 %v206, 1.0
    %v215 = vadd.f32 %v207, 1.0
    %v216 = vadd.f32 %v208, 1.0
    %v217 = vadd.f32 %v209, 1.0
    %v218 = vadd.f32 %v210, 1.0
    %v219 = vadd.f32 %v211, 1.0
    %v220 = vmul.f32 %v212, 0.5
    %v221 = vmul.f32 %v213, 0.5
    %v222 = vmul.f32 %v214, 0.5
    %v223 = vmul.f32 %v215, 0.5
    %v224 = vmul.f32 %v216, 0.5
    %v225 = vmul.f32 %v217, 0.5
    %v226 = vmul.f32 %v218, 0.5
    %v227 = vmul.f32 %v219, 0.5
    %v228 = vmul.f32 %v141, %v220
    %v229 = vmul.f32 %v144, %v221
    %v230 = vmul.f32 %v147, %v222
    %v231 = vmul.f32 %v150, %v223
    %v232 = vmul.f32 %v153, %v224
    %v233 = vmul.f32 %v156, %v225
    %v234 = vmul.f32 %v159, %v226
    %v235 = vmul.f32 %v162, %v227
    %v236 = vadd.f32 %v71, %v228
    %v237 = vadd.f32 %v74, %v229
    %v238 = vadd.f32 %v77, %v230
    %v239 = vadd.f32 %v80, %v231
    %v240 = vadd.f32 %v236, %v232
    %v241 = vadd.f32 %v237, %v233
    %v242 = vadd.f32 %v238, %v234
    %v243 = vadd.f32 %v239, %v235
    %v244 = vld [vmem:[#allocation2 + $0xa8] sm:$0xff]
    %v245 = vld [vmem:[#allocation2 + $0xb0] sm:$0xff]
    %v246 = vld [vmem:[#allocation2 + $0xb8] sm:$0xff]
    %v247 = vld [vmem:[#allocation2 + $0xc0] sm:$0xff]
    %v248 = vld [vmem:[#allocation2 + $0xc8] sm:$0xff]
    %v249 = vld [vmem:[#allocation2 + $0xd0] sm:$0xff]
    %v250 = vld [vmem:[#allocation2 + $0xd8] sm:$0xff]
    %v251 = vld [vmem:[#allocation2 + $0xe0] sm:$0xff]
    %v253 = vsel %vm98, %v240, 0
    %v256 = vsel %vm98, %v241, 0
    %v259 = vsel %vm98, %v242, 0
    %v262 = vsel %vm98, %v243, 0
    %264 = vmatpush.msra.mxu0 0.0
    %265 = vmatpush.msra.mxu0 0.0
    %266 = vmatpush.msra.mxu0 0.0
    %267 = vmatpush.msra.mxu0 0.0
    %268 = vmatpush.msra.mxu0 0.0
    %269 = vmatpush.msra.mxu0 0.0
    %270 = vmatpush.msra.mxu0 0.0
    %271 = vmatpush.msra.mxu0 0.0
    %272 = vmatpush.msra.mxu0 0.0
    %273 = vmatpush.msra.mxu0 0.0
    %274 = vmatpush.msra.mxu0 0.0
    %275 = vmatpush.msra.mxu0 0.0
    %276 = vmatpush.msra.mxu0 %v247
    %277 = vmatpush.msra.mxu0 %v246
    %278 = vmatpush.msra.mxu0 %v245
    %279 = vmatpush.msra.mxu0 %v244
    %280 = vmatmul.f32.gmra.mxu0 %v253
    %v281 = vpop.f32.mrf.mxu0
    %v282 = vadd.f32 %v248, %v281
    %283 = vmatmul.f32.gmra.mxu0 %v256
    %v284 = vpop.f32.mrf.mxu0
    %v285 = vadd.f32 %v249, %v284
    %286 = vmatmul.f32.gmra.mxu0 %v259
    %v287 = vpop.f32.mrf.mxu0
    %v288 = vadd.f32 %v250, %v287
    %289 = vmatmul.f32.gmra.mxu0 %v262
    %v290 = vpop.f32.mrf.mxu0
    %v291 = vadd.f32 %v251, %v290
    %292 = vdwg.mxu0
    %v293 = vmul.f32 %v282, %v282
    %v294 = vmul.f32 %v285, %v285
    %v295 = vmul.f32 %v288, %v288
    %v296 = vmul.f32 %v291, %v291
    %v297 = vmul.f32 %v282, %v293
    %v298 = vmul.f32 %v285, %v294
    %v299 = vmul.f32 %v288, %v295
    %v300 = vmul.f32 %v291, %v296
    %v301 = vmul.f32 %v297, 0.044715
    %v302 = vmul.f32 %v298, 0.044715
    %v303 = vmul.f32 %v299, 0.044715
    %v304 = vmul.f32 %v300, 0.044715
    %v305 = vadd.f32 %v282, %v301
    %v306 = vadd.f32 %v285, %v302
    %v307 = vadd.f32 %v288, %v303
    %v308 = vadd.f32 %v291, %v304
    %v309 = vmul.f32 %v305, 0.7978846
    %v310 = vmul.f32 %v306, 0.7978846
    %v311 = vmul.f32 %v307, 0.7978846
    %v312 = vmul.f32 %v308, 0.7978846
    %v313 = vtanh.pop %v309
    %v314 = vtanh.pop %v310
    %v315 = vtanh.pop %v311
    %v316 = vtanh.pop %v312
    %v317 = vadd.f32 %v313, 1.0
    %v318 = vadd.f32 %v314, 1.0
    %v319 = vadd.f32 %v315, 1.0
    %v320 = vadd.f32 %v316, 1.0
    %v321 = vmul.f32 %v317, 0.5
    %v322 = vmul.f32 %v318, 0.5
    %v323 = vmul.f32 %v319, 0.5
    %v324 = vmul.f32 %v320, 0.5
    %v325 = vmul.f32 %v282, %v321
    %v326 = vmul.f32 %v285, %v322
    %v327 = vmul.f32 %v288, %v323
    %v328 = vmul.f32 %v291, %v324
    %v329 = vld [vmem:[#allocation2 + $0xe8] sm:$0xff]
    %v330 = vld [vmem:[#allocation2 + $0xf0] sm:$0xff]
    %v331 = vld [vmem:[#allocation2 + $0xf8] sm:$0xff]
    %v332 = vld [vmem:[#allocation2 + $0x100] sm:$0xff]
    %v333 = vld [vmem:[#allocation2 + $0x108] sm:$0xff]
    %v334 = vld [vmem:[#allocation2 + $0x110] sm:$0xff]
    %v335 = vld [vmem:[#allocation2 + $0x118] sm:$0xff]
    %v336 = vld [vmem:[#allocation2 + $0x120] sm:$0xff]
    %vm337 = vcmask 523264
    %v339 = vsel %vm337, %v325, 0
    %v342 = vsel %vm337, %v326, 0
    %v345 = vsel %vm337, %v327, 0
    %v348 = vsel %vm337, %v328, 0
    %350 = vmatpush.msra.mxu0 0.0
    %351 = vmatpush.msra.mxu0 0.0
    %352 = vmatpush.msra.mxu0 0.0
    %353 = vmatpush.msra.mxu0 0.0
    %354 = vmatpush.msra.mxu0 0.0
    %355 = vmatpush.msra.mxu0 0.0
    %356 = vmatpush.msra.mxu0 0.0
    %357 = vmatpush.msra.mxu0 0.0
    %358 = vmatpush.msra.mxu0 %v336
    %359 = vmatpush.msra.mxu0 %v335
    %360 = vmatpush.msra.mxu0 %v334
    %361 = vmatpush.msra.mxu0 %v333
    %362 = vmatpush.msra.mxu0 %v332
    %363 = vmatpush.msra.mxu0 %v331
    %364 = vmatpush.msra.mxu0 %v330
    %365 = vmatpush.msra.mxu0 %v329
    %366 = vmatmul.f32.gmra.mxu0 %v339
    %v367 = vpop.f32.mrf.mxu0
    %v368 = vadd.f32 0.0, %v367
    %369 = vmatmul.f32.gmra.mxu0 %v342
    %v370 = vpop.f32.mrf.mxu0
    %v371 = vadd.f32 0.0, %v370
    %372 = vmatmul.f32.gmra.mxu0 %v345
    %v373 = vpop.f32.mrf.mxu0
    %v374 = vadd.f32 0.0, %v373
    %375 = vmatmul.f32.gmra.mxu0 %v348
    %v376 = vpop.f32.mrf.mxu0
    %v377 = vadd.f32 0.0, %v376
    %378 = vdwg.mxu0
    %v379 = vadd.f32 %v240, %v368
    %v380 = vadd.f32 %v241, %v371
    %v381 = vadd.f32 %v242, %v374
    %v382 = vadd.f32 %v243, %v377
    %v383 = vld [vmem:[#allocation2 + $0x128] sm:$0xff]
    %v384 = vld [vmem:[#allocation2 + $0x130] sm:$0xff]
    %v385 = vld [vmem:[#allocation2 + $0x138] sm:$0xff]
    %v386 = vld [vmem:[#allocation2 + $0x140] sm:$0xff]
    %v387 = vadd.f32 %v379, %v383
    %v388 = vadd.f32 %v380, %v384
    %v389 = vadd.f32 %v381, %v385
    %v390 = vadd.f32 %v382, %v386
    %v391 = vld [vmem:[#allocation2 + $0x158] sm:$0xff]
    %v392 = vld [vmem:[#allocation2 + $0x160] sm:$0xff]
    %v393 = vld [vmem:[#allocation2 + $0x168] sm:$0xff]
    %v394 = vld [vmem:[#allocation2 + $0x170] sm:$0xff]
    %v396 = vsel %vm98, %v387, 0
    %v399 = vsel %vm98, %v388, 0
    %v402 = vsel %vm98, %v389, 0
    %v405 = vsel %vm98, %v390, 0
    %407 = vmatpush.msra.mxu0 0.0
    %408 = vmatpush.msra.mxu0 0.0
    %409 = vmatpush.msra.mxu0 0.0
    %410 = vmatpush.msra.mxu0 0.0
    %411 = vmatpush.msra.mxu0 0.0
    %412 = vmatpush.msra.mxu0 0.0
    %413 = vmatpush.msra.mxu0 0.0
    %414 = vmatpush.msra.mxu0 0.0
    %415 = vmatpush.msra.mxu0 0.0
    %416 = vmatpush.msra.mxu0 0.0
    %417 = vmatpush.msra.mxu0 0.0
    %418 = vmatpush.msra.mxu0 0.0
    %419 = vmatpush.msra.mxu0 %v394
    %420 = vmatpush.msra.mxu0 %v393
    %421 = vmatpush.msra.mxu0 %v392
    %422 = vmatpush.msra.mxu0 %v391
    %423 = vmatmul.f32.gmra.mxu0 %v396
    %v424 = vpop.f32.mrf.mxu0
    %v425 = vadd.f32 0.0, %v424
    %426 = vmatmul.f32.gmra.mxu0 %v399
    %v427 = vpop.f32.mrf.mxu0
    %v428 = vadd.f32 0.0, %v427
    %429 = vmatmul.f32.gmra.mxu0 %v402
    %v430 = vpop.f32.mrf.mxu0
    %v431 = vadd.f32 0.0, %v430
    %432 = vmatmul.f32.gmra.mxu0 %v405
    %v433 = vpop.f32.mrf.mxu0
    %v434 = vadd.f32 0.0, %v433
    %435 = vdwg.mxu0
    %v436 = vld [vmem:[#allocation2 + $0x148] sm:$0xff]
    %v437 = vld [vmem:[#allocation2 + $0x150] sm:$0xff]
    %v438 = vld [vmem:[#allocation2 + $0x178] sm:$0xff]
    %v439 = vld [vmem:[#allocation2 + $0x180] sm:$0xff]
    %v441 = vsel %vm98, %v436, 0
    %v444 = vsel %vm98, %v437, 0
    %446 = vmatpush.msra.mxu0 0.0
    %447 = vmatpush.msra.mxu0 0.0
    %448 = vmatpush.msra.mxu0 0.0
    %449 = vmatpush.msra.mxu0 0.0
    %450 = vmatpush.msra.mxu0 0.0
    %451 = vmatpush.msra.mxu0 0.0
    %452 = vmatpush.msra.mxu0 0.0
    %453 = vmatpush.msra.mxu0 0.0
    %454 = vmatpush.msra.mxu0 0.0
    %455 = vmatpush.msra.mxu0 0.0
    %456 = vmatpush.msra.mxu0 0.0
    %457 = vmatpush.msra.mxu0 0.0
    %458 = vmatpush.msra.mxu0 %v434
    %459 = vmatpush.msra.mxu0 %v431
    %460 = vmatpush.msra.mxu0 %v428
    %461 = vmatpush.msra.mxu0 %v425
    %462 = vmatmul.f32.gmra.mxu0 %v441
    %v463 = vpop.f32.mrf.mxu0
    %v464 = vadd.f32 %v438, %v463
    %465 = vmatmul.f32.gmra.mxu0 %v444
    %v466 = vpop.f32.mrf.mxu0
    %v467 = vadd.f32 %v439, %v466
    %468 = vdwg.mxu0
    %469 = vst.msk [vmem:[%s2] sm:$0xff] %vm36, %v464
    %470 = vst.msk [vmem:[%s2 + $0x8] sm:$0xff] %vm36, %v467
    // Predicated region
    $region14: #{tpu_custom_call.1} parent=1 // pred_check
      _
    $region15: #{tpu_custom_call.1} parent=1 // pred_check_branch
      %472 = sbr.rel (0) target = $region17
    $region16: #{tpu_custom_call.1} parent=1 // pred_region
      _
    $region17: #{tpu_custom_call.1} parent=1 // pred_fallthru
      _
    // Predicated region
    $region18: #{tpu_custom_call.1} parent=1 // pred_check
      _
    $region19: #{tpu_custom_call.1} parent=1 // pred_check_branch
      %474 = sbr.rel (0) target = $region21
    $region20: #{tpu_custom_call.1} parent=1 // pred_region
      _
    $region21: #{tpu_custom_call.1} parent=1 // pred_fallthru
      _
    %475 = vsyncpa [#allocation3], 1

</llo_original>
